<compile_context>
chip_gen: v5e
topology: v5e:2x2
jax: 0.10.0
libtpu: 0.0.40
codegen_flags: <defaults>
</compile_context>

<pallas_src>
import functools

import jax
import jax.numpy as jnp
from jax.experimental import pallas as pl
from jax.experimental.pallas import tpu as pltpu


def _round_up(x, m):
    return ((x + m - 1) // m) * m


# --------------------------------------------------------------------------
# Phase 1: per-edge messages (computed exactly once over an edge-only grid).
# --------------------------------------------------------------------------
def _message_kernel(review_ref, src_ref, w_all_ref, h_all_ref, m_ref,
                    *, d_pad, pa_col, ra_col, cj_col):
    te = review_ref.shape[0]
    n_src_pad = h_all_ref.shape[0]

    rfeat = review_ref[...]                                         # bf16 [TE, Dp]

    # Fused [rf | pa_logit | ra_logit] matmul -- one lane-dense bf16 MXU pass,
    # f32 accumulation.
    rpw = jnp.dot(rfeat, w_all_ref[...],
                  preferred_element_type=jnp.float32)               # [TE, Dall]
    rf = rpw[:, :d_pad]                                             # [TE, Dp]
    pa = jax.nn.sigmoid(rpw[:, pa_col:pa_col + 1])                  # [TE, 1]
    ra = jax.nn.sigmoid(rpw[:, ra_col:ra_col + 1])                  # [TE, 1]

    # On-the-fly one-hot gather of [h | cj] for the source node of each edge.
    # One-hots are exact 0/1 in bf16, so the bf16 MXU pass stays a true gather.
    src_ids = src_ref[...]                                          # [TE, 1] i32
    src_oh = (jax.lax.broadcasted_iota(jnp.int32, (te, n_src_pad), 1)
              == src_ids).astype(jnp.bfloat16)                      # [TE, Ns]
    hsc = jnp.dot(src_oh, h_all_ref[...],
                  preferred_element_type=jnp.float32)               # [TE, Dall]
    h_src = hsc[:, :d_pad]                                          # [TE, Dp]
    cj_e = hsc[:, cj_col:cj_col + 1]                                # [TE, 1]

    # Per-edge message (dropout_rate = 0.0 -> identity).  When pa/ra/cj are
    # packed into the padding lanes, lanes >= D carry garbage; they are sliced
    # off after the scatter phase.
    m = (h_src * pa + rf * ra) * cj_e                               # [TE, Dp]
    m_ref[...] = m.astype(m_ref.dtype)


# --------------------------------------------------------------------------
# Phase 2: one-hot scatter-sum of the precomputed messages into dst tiles.
# --------------------------------------------------------------------------
def _scatter_kernel(dst_ref, m_ref, ci_ref, out_ref):
    e_idx = pl.program_id(1)
    td = out_ref.shape[0]
    te = m_ref.shape[0]

    # Output block is resident across the edge axis -> use it as accumulator.
    @pl.when(e_idx == 0)
    def _():
        out_ref[...] = jnp.zeros_like(out_ref)

    d_base = pl.program_id(0) * td
    dst_ids = dst_ref[...]                                          # [1, TE] i32
    dst_oh = (jax.lax.broadcasted_iota(jnp.int32, (td, te), 0) + d_base
              == dst_ids).astype(jnp.bfloat16)                      # [TD, TE]
    out_ref[...] += jnp.dot(dst_oh, m_ref[...],
                            preferred_element_type=jnp.float32)

    @pl.when(e_idx == pl.num_programs(1) - 1)
    def _():
        out_ref[...] *= ci_ref[...]


# --------------------------------------------------------------------------
# Host-side wrappers.
# --------------------------------------------------------------------------
def gcmc_prepare(weight_h, cj, w_prob_t, w_rev_t, w_rw_t):
    """Build the padded / fused bf16 weight and node tables once per graph.

    weight_h : [N_src, D]   self.weight (srcdata['h'])
    cj       : [N_src, 1]   srcdata['cj']
    w_prob_t : [D, 1]       prob_score.weight^T
    w_rev_t  : [D, 1]       review_score.weight^T
    w_rw_t   : [D, D]       review_w.weight^T
    """
    n_src, d = weight_h.shape
    d_pad = _round_up(d, 128)
    if d_pad - d >= 2:
        # Pack pa/ra logit columns and cj into the existing padding lanes.
        d_all = d_pad
        pa_col, ra_col, cj_col = d, d + 1, d
    else:
        # D is (nearly) a multiple of 128: append one extra 128-lane block.
        d_all = d_pad + 128
        pa_col, ra_col, cj_col = d_pad, d_pad + 1, d_pad
    n_src_pad = _round_up(n_src, 128)

    f32 = jnp.float32
    # Fused weight: [Wrw^T | Wp^T | Wr^T].
    w_all = jnp.zeros((d_pad, d_all), f32)
    w_all = w_all.at[:d, :d].set(w_rw_t)
    w_all = w_all.at[:d, pa_col].set(w_prob_t[:, 0])
    w_all = w_all.at[:d, ra_col].set(w_rev_t[:, 0])
    # Fused node table: [h | cj].
    h_all = jnp.zeros((n_src_pad, d_all), f32)
    h_all = h_all.at[:n_src, :d].set(weight_h)
    h_all = h_all.at[:n_src, cj_col].set(cj[:, 0])

    meta = dict(d=d, d_pad=d_pad, d_all=d_all, n_src_pad=n_src_pad,
                pa_col=pa_col, ra_col=ra_col, cj_col=cj_col)
    return w_all.astype(jnp.bfloat16), h_all.astype(jnp.bfloat16), meta


def gcmc_graph_conv(review_feat, src, dst, ci, w_all, h_all, meta,
                    *, te=512, td=256):
    """Forward pass of GCMCGraphConv using the prepared fused tables."""
    e, d = review_feat.shape
    n_dst = ci.shape[0]
    d_pad, d_all = meta["d_pad"], meta["d_all"]
    n_src_pad = meta["n_src_pad"]
    assert d == meta["d"]

    # Tile sizes (edge tile multiple of 128, dst tile multiple of 8).
    te = _round_up(min(te, _round_up(e, 128)), 128)
    e_pad = _round_up(e, te)
    td = _round_up(min(td, _round_up(n_dst, 8)), 8)
    n_dst_pad = _round_up(n_dst, td)
    n_e_tiles = e_pad // te
    n_d_tiles = n_dst_pad // td

    bf16, f32 = jnp.bfloat16, jnp.float32
    review_p = jnp.zeros((e_pad, d_pad), bf16).at[:e, :d].set(
        review_feat.astype(bf16))
    src_col = jnp.zeros((e_pad, 1), jnp.int32).at[:e, 0].set(src.astype(jnp.int32))
    # Padded edges get dst = -1 so they match no destination row.
    dst_row = jnp.full((1, e_pad), -1, jnp.int32).at[0, :e].set(dst.astype(jnp.int32))
    ci_p = jnp.zeros((n_dst_pad, 1), f32).at[:n_dst, :].set(ci.astype(f32))

    # ---- Phase 1: per-edge messages, computed exactly once. ---------------
    msg_vmem = 2 * (te * d_pad * 2 + te * 128 * 4 + d_pad * d_all * 2
                    + n_src_pad * d_all * 2 + te * d_pad * 2) + (8 << 20)
    msg = pl.pallas_call(
        functools.partial(_message_kernel, d_pad=d_pad, pa_col=meta["pa_col"],
                          ra_col=meta["ra_col"], cj_col=meta["cj_col"]),
        out_shape=jax.ShapeDtypeStruct((e_pad, d_pad), bf16),
        grid=(n_e_tiles,),
        in_specs=[
            pl.BlockSpec((te, d_pad), lambda ei: (ei, 0)),           # review_feat
            pl.BlockSpec((te, 1), lambda ei: (ei, 0)),               # src ids
            pl.BlockSpec((d_pad, d_all), lambda ei: (0, 0)),         # fused weights
            pl.BlockSpec((n_src_pad, d_all), lambda ei: (0, 0)),     # [h | cj]
        ],
        out_specs=pl.BlockSpec((te, d_pad), lambda ei: (ei, 0)),
        compiler_params=pltpu.CompilerParams(
            dimension_semantics=("parallel",),
            vmem_limit_bytes=int(min(max(msg_vmem, 32 << 20), 48 << 20))),
        cost_estimate=pl.CostEstimate(
            flops=n_e_tiles * (2 * te * d_pad * d_all
                               + 2 * te * n_src_pad * d_all
                               + 5 * te * d_pad),
            transcendentals=n_e_tiles * 2 * te,
            bytes_accessed=2 * (e_pad * d_pad * 2) + d_pad * d_all * 2
                           + n_src_pad * d_all * 2 + e_pad * 4),
    )(review_p, src_col, w_all, h_all)

    # ---- Phase 2: one-hot scatter-sum into destination tiles. -------------
    sc_vmem = 2 * (te * 128 * 4 + te * d_pad * 2 + td * 128 * 4
                   + td * d_pad * 4) + (8 << 20)
    out = pl.pallas_call(
        _scatter_kernel,
        out_shape=jax.ShapeDtypeStruct((n_dst_pad, d_pad), f32),
        grid=(n_d_tiles, n_e_tiles),
        in_specs=[
            pl.BlockSpec((1, te), lambda di, ei: (0, ei)),           # dst ids
            pl.BlockSpec((te, d_pad), lambda di, ei: (ei, 0)),       # messages
            pl.BlockSpec((td, 1), lambda di, ei: (di, 0)),           # ci
        ],
        out_specs=pl.BlockSpec((td, d_pad), lambda di, ei: (di, 0)),
        compiler_params=pltpu.CompilerParams(
            dimension_semantics=("parallel", "arbitrary"),
            vmem_limit_bytes=int(min(max(sc_vmem, 32 << 20), 48 << 20))),
        cost_estimate=pl.CostEstimate(
            flops=n_d_tiles * n_e_tiles * 2 * td * te * d_pad,
            transcendentals=0,
            bytes_accessed=n_d_tiles * e_pad * (d_pad * 2 + 4)
                           + n_dst_pad * (d_pad + 1) * 4),
    )(dst_row, msg, ci_p)

    return out[:n_dst, :d]


def xavier_uniform(key, shape):
    fan_in, fan_out = shape[0], shape[1]
    bound = (6.0 / (fan_in + fan_out)) ** 0.5
    return jax.random.uniform(key, shape, jnp.float32, -bound, bound)


if __name__ == "__main__":
    # Small synthetic graph consistent with the module.
    in_feats = 16    # number of source nodes (forward uses self.weight as srcdata['h'])
    out_feats = 32   # feature dim D
    n_dst = 8        # number of destination nodes
    n_edges = 24

    key = jax.random.PRNGKey(0)
    ks = jax.random.split(key, 9)

    # Parameters (xavier-uniform init, as in reset_parameters).
    weight = xavier_uniform(ks[0], (in_feats, out_feats))        # self.weight
    wp = xavier_uniform(ks[1], (1, out_feats))                   # prob_score.weight
    wr = xavier_uniform(ks[2], (1, out_feats))                   # review_score.weight
    wrw = xavier_uniform(ks[3], (out_feats, out_feats))          # review_w.weight

    # Graph data.
    review_feat = jax.random.normal(ks[4], (n_edges, out_feats), jnp.float32)
    src = jax.random.randint(ks[5], (n_edges,), 0, in_feats)
    dst = jax.random.randint(ks[6], (n_edges,), 0, n_dst)
    cj = jax.random.uniform(ks[7], (in_feats, 1), jnp.float32, 0.1, 1.0)   # srcdata['cj']
    ci = jax.random.uniform(ks[8], (n_dst, 1), jnp.float32, 0.1, 1.0)      # dstdata['ci']

    # nn.Linear computes y = x @ W^T -> pre-transpose once on the host.
    w_prob_t = wp.T                                  # [D, 1]
    w_rev_t = wr.T                                   # [D, 1]
    w_rw_t = wrw.T                                   # [D, D]

    # Padded/fused tables are static across forward calls -> built once.
    w_all, h_all, meta = gcmc_prepare(weight, cj, w_prob_t, w_rev_t, w_rw_t)

    out = gcmc_graph_conv(review_feat, src, dst, ci, w_all, h_all, meta)
    out = jax.block_until_ready(out)

    # Pure-JAX f32 reference for correctness.
    pa_ref = jax.nn.sigmoid(review_feat @ w_prob_t)
    ra_ref = jax.nn.sigmoid(review_feat @ w_rev_t)
    rf_ref = review_feat @ w_rw_t
    m_ref = (weight[src] * pa_ref + rf_ref * ra_ref) * cj[src]
    agg_ref = jax.ops.segment_sum(m_ref, dst, num_segments=n_dst)
    rst_ref = agg_ref * ci

    assert out.shape == (n_dst, out_feats)
    # bf16 MXU path (f32 accumulation) vs f32 reference -> relaxed tolerance.
    assert jnp.allclose(out, rst_ref, atol=2e-2, rtol=2e-2), \
        float(jnp.max(jnp.abs(out - rst_ref)))
    print("KERNEL_OK")
</pallas_src>

<mosaic_0001>
module attributes {stable_mosaic.version = 11 : i64} {
  func.func @_message_kernel(%arg0: i32, %arg1: memref<128x128xbf16, #tpu.memory_space<vmem>>, %arg2: memref<128x1xi32, #tpu.memory_space<vmem>>, %arg3: memref<128x128xbf16, #tpu.memory_space<vmem>>, %arg4: memref<128x128xbf16, #tpu.memory_space<vmem>>, %arg5: memref<128x128xbf16, #tpu.memory_space<vmem>>) attributes {dimension_semantics = [#tpu.dimension_semantics<parallel>], iteration_bounds = array<i64: 1>, scalar_prefetch = 0 : i64, scratch_operands = 0 : i64, tpu.core_type = #tpu.core_type<tc>, window_params = [{transform_indices = @transform_0, window_bounds = array<i64: 128, 128>}, {transform_indices = @transform_1, window_bounds = array<i64: 128, 1>}, {pipeline_mode = #tpu.pipeline_mode<synchronous>, transform_indices = @transform_2, window_bounds = array<i64: 128, 128>}, {pipeline_mode = #tpu.pipeline_mode<synchronous>, transform_indices = @transform_3, window_bounds = array<i64: 128, 128>}, {transform_indices = @transform_4, window_bounds = array<i64: 128, 128>}]} {
    %c0 = arith.constant 0 : index
    %c0_0 = arith.constant 0 : index
    %0 = vector.load %arg1[%c0, %c0_0] : memref<128x128xbf16, #tpu.memory_space<vmem>>, vector<128x128xbf16>
    %c0_1 = arith.constant 0 : index
    %c0_2 = arith.constant 0 : index
    %1 = vector.load %arg3[%c0_1, %c0_2] : memref<128x128xbf16, #tpu.memory_space<vmem>>, vector<128x128xbf16>
    %cst = arith.constant dense<0.000000e+00> : vector<128x128xf32>
    %2 = tpu.matmul %0, %1, %cst {dimension_numbers = #tpu.dot_dimension_numbers<[1], [0], [0], [1], [0, 0, 1, 1], [], []>} : vector<128x128xbf16>, vector<128x128xbf16>, vector<128x128xf32> -> vector<128x128xf32>
    %3 = vector.extract_strided_slice %2 {offsets = [0, 32], sizes = [128, 1], strides = [1, 1]} : vector<128x128xf32> to vector<128x1xf32>
    %4 = arith.negf %3 : vector<128x1xf32>
    %5 = math.exp %4 : vector<128x1xf32>
    %cst_3 = arith.constant 1.000000e+00 : f32
    %6 = vector.broadcast %cst_3 : f32 to vector<128x1xf32>
    %7 = arith.addf %6, %5 : vector<128x1xf32>
    %8 = arith.divf %6, %7 : vector<128x1xf32>
    %9 = vector.extract_strided_slice %2 {offsets = [0, 33], sizes = [128, 1], strides = [1, 1]} : vector<128x128xf32> to vector<128x1xf32>
    %10 = arith.negf %9 : vector<128x1xf32>
    %11 = math.exp %10 : vector<128x1xf32>
    %cst_4 = arith.constant 1.000000e+00 : f32
    %12 = vector.broadcast %cst_4 : f32 to vector<128x1xf32>
    %13 = arith.addf %12, %11 : vector<128x1xf32>
    %14 = arith.divf %12, %13 : vector<128x1xf32>
    %c0_5 = arith.constant 0 : index
    %c0_6 = arith.constant 0 : index
    %15 = vector.load %arg2[%c0_5, %c0_6] : memref<128x1xi32, #tpu.memory_space<vmem>>, vector<128x1xi32>
    %16 = tpu.iota {dimensions = array<i32: 1>} : vector<128x128xi32>
    %17 = vector.broadcast %15 : vector<128x1xi32> to vector<128x128xi32>
    %18 = arith.cmpi eq, %16, %17 : vector<128x128xi32>
    %19 = arith.extui %18 : vector<128x128xi1> to vector<128x128xi32>
    %20 = arith.sitofp %19 : vector<128x128xi32> to vector<128x128xf32>
    %21 = arith.truncf %20 : vector<128x128xf32> to vector<128x128xbf16>
    %c0_7 = arith.constant 0 : index
    %c0_8 = arith.constant 0 : index
    %22 = vector.load %arg4[%c0_7, %c0_8] : memref<128x128xbf16, #tpu.memory_space<vmem>>, vector<128x128xbf16>
    %cst_9 = arith.constant dense<0.000000e+00> : vector<128x128xf32>
    %23 = tpu.matmul %21, %22, %cst_9 {dimension_numbers = #tpu.dot_dimension_numbers<[1], [0], [0], [1], [0, 0, 1, 1], [], []>} : vector<128x128xbf16>, vector<128x128xbf16>, vector<128x128xf32> -> vector<128x128xf32>
    %24 = vector.extract_strided_slice %23 {offsets = [0, 32], sizes = [128, 1], strides = [1, 1]} : vector<128x128xf32> to vector<128x1xf32>
    %25 = vector.broadcast %8 : vector<128x1xf32> to vector<128x128xf32>
    %26 = arith.mulf %23, %25 : vector<128x128xf32>
    %27 = vector.broadcast %14 : vector<128x1xf32> to vector<128x128xf32>
    %28 = arith.mulf %2, %27 : vector<128x128xf32>
    %29 = arith.addf %26, %28 : vector<128x128xf32>
    %30 = vector.broadcast %24 : vector<128x1xf32> to vector<128x128xf32>
    %31 = arith.mulf %29, %30 : vector<128x128xf32>
    %32 = arith.truncf %31 : vector<128x128xf32> to vector<128x128xbf16>
    %c0_10 = arith.constant 0 : index
    %c0_11 = arith.constant 0 : index
    %33 = vector.load %arg5[%c0_10, %c0_11] : memref<128x128xbf16, #tpu.memory_space<vmem>>, vector<128x128xbf16>
    tpu.vector_store %arg5[%c0_10, %c0_11], %32 {strides = array<i32>} : memref<128x128xbf16, #tpu.memory_space<vmem>>, vector<128x128xbf16>,
    return
  }
  func.func @transform_0(%arg0: i32) -> (i32, i32) {
    %c0_i32 = arith.constant 0 : i32
    %c0_i32_0 = arith.constant 0 : i32
    return %arg0, %c0_i32 : i32, i32
  }
  func.func @transform_1(%arg0: i32) -> (i32, i32) {
    %c0_i32 = arith.constant 0 : i32
    %c0_i32_0 = arith.constant 0 : i32
    return %arg0, %c0_i32 : i32, i32
  }
  func.func @transform_2(%arg0: i32) -> (i32, i32) {
    %c0_i32 = arith.constant 0 : i32
    %c0_i32_0 = arith.constant 0 : i32
    %c0_i32_1 = arith.constant 0 : i32
    return %c0_i32, %c0_i32_0 : i32, i32
  }
  func.func @transform_3(%arg0: i32) -> (i32, i32) {
    %c0_i32 = arith.constant 0 : i32
    %c0_i32_0 = arith.constant 0 : i32
    %c0_i32_1 = arith.constant 0 : i32
    return %c0_i32, %c0_i32_0 : i32, i32
  }
  func.func @transform_4(%arg0: i32) -> (i32, i32) {
    %c0_i32 = arith.constant 0 : i32
    %c0_i32_0 = arith.constant 0 : i32
    return %arg0, %c0_i32 : i32, i32
  }
}

</mosaic_0001>

<llo_original>
// kernel: tpu_custom_call.1
$region0: #{tpu_custom_call.1}
  #allocation0 [shape = 'u32[]', space=smem, size = 0x4, offset = 0x4, fixed_abs, tag = 'smem constant byte address 0x4 - core index']
  #allocation1 [shape = 'u32[72,128]{1,0:T(1,128)}', space=vmem, size = 0x9000, scoped, tag = 'internal scratch']
  %s0 = inlined_call_operand.vmem [shape: bf16[128,128], index: 0, kind: input, shape index: {}]
  %s1 = inlined_call_operand.vmem [shape: s32[128,1], index: 1, kind: input, shape index: {}]
  %s2 = inlined_call_operand.vmem [shape: bf16[128,128], index: 2, kind: input, shape index: {}]
  %s3 = inlined_call_operand.hbm [shape: bf16[128,128], index: 3, kind: input, shape index: {}]
  %s4 = inlined_call_operand.hbm [shape: bf16[128,128], index: 4, kind: output, shape index: {}]
  %s5 = sld [smem:[#allocation0]]
  $region30: #{tpu_custom_call.1} parent=0
    _
  %s7 = ssub.s32 1, %s5
  %s8 = scalar_select 0, %s7, %s5
  $region1: #{tpu_custom_call.1} parent=0
    #allocation2 [shape = 'u8[32768]{0}', space=vmem, size = 0x8000, scoped, tag = 'input window, operand 3, single buffered']
    #allocation3 [shape = 's32[1]{0}', space=sflag, size = 0x4, scoped, tag = 'scoped memory for tpu_custom_call.1']
    #allocation4 [shape = 's32[1]{0}', space=sflag, size = 0x4, scoped, tag = 'scoped memory for tpu_custom_call.1']
    #allocation5 [shape = 'u8[32768]{0}', space=vmem, size = 0x8000, scoped, tag = 'output window, operand 0, single buffered']
    %9 = vsyncpa [#allocation3], 0
    %10 = vsyncpa [#allocation4], 0
    // Predicated region
    $region2: #{tpu_custom_call.1} parent=1 // pred_check
      _
    $region3: #{tpu_custom_call.1} parent=1 // pred_check_branch
      %12 = sbr.rel (0) target = $region5
    $region4: #{tpu_custom_call.1} parent=1 // pred_region
      _
    $region5: #{tpu_custom_call.1} parent=1 // pred_fallthru
      _
    // Predicated region
    $region6: #{tpu_custom_call.1} parent=1 // pred_check
      _
    $region7: #{tpu_custom_call.1} parent=1 // pred_check_branch
      %14 = sbr.rel (0) target = $region9
    $region8: #{tpu_custom_call.1} parent=1 // pred_region
      _
    $region9: #{tpu_custom_call.1} parent=1 // pred_fallthru
      _
    // Predicated region
    $region10: #{tpu_custom_call.1} parent=1 // pred_check
      _
    $region11: #{tpu_custom_call.1} parent=1 // pred_check_branch
      %16 = sbr.rel (0) target = $region13
    $region12: #{tpu_custom_call.1} parent=1 // pred_region
      _
    $region13: #{tpu_custom_call.1} parent=1 // pred_fallthru
      _
    // Predicated region
    $region14: #{tpu_custom_call.1} parent=1 // pred_check
      _
    $region15: #{tpu_custom_call.1} parent=1 // pred_check_branch
      %18 = sbr.rel (0) target = $region17
    $region16: #{tpu_custom_call.1} parent=1 // pred_region
      %20 = vsyncadd [#allocation3], 0
      %s21 = sshll.u32 %s3, 4
      %s22 = int_to_ptr.hbm [resolvable:$true] %s21
      %s23 = sshll.u32 [#allocation2], 4
      %s24 = int_to_ptr.vmem [resolvable:$true] %s23
      %29 = dma.hbm_to_vmem [thread:$0]  %s22, 1024, %s24, [#allocation3], 64, 64, 4
    $region17: #{tpu_custom_call.1} parent=1 // pred_fallthru
      _
    // Predicated region
    $region18: #{tpu_custom_call.1} parent=1 // pred_check
      _
    $region19: #{tpu_custom_call.1} parent=1 // pred_check_branch
      %31 = sbr.rel (0) target = $region21
    $region20: #{tpu_custom_call.1} parent=1 // pred_region
      %33 = dma.done [#allocation3], 1024
    $region21: #{tpu_custom_call.1} parent=1 // pred_fallthru
      _
    %v34 = vld [vmem:[%s0] sm:$0xf]
    %v35 = vld [vmem:[%s0 + $0x4] sm:$0xf]
    %v36 = vld [vmem:[%s0 + $0x8] sm:$0xf]
    %v37 = vld [vmem:[%s0 + $0xc] sm:$0xf]
    %v38 = vld [vmem:[%s0 + $0x10] sm:$0xf]
    %v39 = vld [vmem:[%s0 + $0x14] sm:$0xf]
    %v40 = vld [vmem:[%s0 + $0x18] sm:$0xf]
    %v41 = vld [vmem:[%s0 + $0x1c] sm:$0xf]
    %v42 = vld [vmem:[%s0 + $0x20] sm:$0xf]
    %v43 = vld [vmem:[%s0 + $0x24] sm:$0xf]
    %v44 = vld [vmem:[%s0 + $0x28] sm:$0xf]
    %v45 = vld [vmem:[%s0 + $0x2c] sm:$0xf]
    %v46 = vld [vmem:[%s0 + $0x30] sm:$0xf]
    %v47 = vld [vmem:[%s0 + $0x34] sm:$0xf]
    %v48 = vld [vmem:[%s0 + $0x38] sm:$0xf]
    %v49 = vld [vmem:[%s0 + $0x3c] sm:$0xf]
    %v50 = vld [vmem:[%s2] sm:$0xf]
    %v51 = vld [vmem:[%s2 + $0x4] sm:$0xf]
    %v52 = vld [vmem:[%s2 + $0x8] sm:$0xf]
    %v53 = vld [vmem:[%s2 + $0xc] sm:$0xf]
    %v54 = vld [vmem:[%s2 + $0x10] sm:$0xf]
    %v55 = vld [vmem:[%s2 + $0x14] sm:$0xf]
    %v56 = vld [vmem:[%s2 + $0x18] sm:$0xf]
    %v57 = vld [vmem:[%s2 + $0x1c] sm:$0xf]
    %v58 = vld [vmem:[%s2 + $0x20] sm:$0xf]
    %v59 = vld [vmem:[%s2 + $0x24] sm:$0xf]
    %v60 = vld [vmem:[%s2 + $0x28] sm:$0xf]
    %v61 = vld [vmem:[%s2 + $0x2c] sm:$0xf]
    %v62 = vld [vmem:[%s2 + $0x30] sm:$0xf]
    %v63 = vld [vmem:[%s2 + $0x34] sm:$0xf]
    %v64 = vld [vmem:[%s2 + $0x38] sm:$0xf]
    %v65 = vld [vmem:[%s2 + $0x3c] sm:$0xf]
    %v82 = vunpack.c.l.b16 %v34
    %v83 = vunpack.c.l.b16 %v35
    %v84 = vunpack.c.l.b16 %v36
    %v85 = vunpack.c.l.b16 %v37
    %v86 = vunpack.c.l.b16 %v38
    %v87 = vunpack.c.l.b16 %v39
    %v88 = vunpack.c.l.b16 %v40
    %v89 = vunpack.c.l.b16 %v41
    %v90 = vunpack.c.l.b16 %v42
    %v91 = vunpack.c.l.b16 %v43
    %v92 = vunpack.c.l.b16 %v44
    %v93 = vunpack.c.l.b16 %v45
    %v94 = vunpack.c.l.b16 %v46
    %v95 = vunpack.c.l.b16 %v47
    %v96 = vunpack.c.l.b16 %v48
    %v97 = vunpack.c.l.b16 %v49
    %v98 = vpack.c.b16 %v83, %v82
    %v99 = vpack.c.b16 %v85, %v84
    %v100 = vpack.c.b16 %v87, %v86
    %v101 = vpack.c.b16 %v89, %v88
    %v102 = vpack.c.b16 %v91, %v90
    %v103 = vpack.c.b16 %v93, %v92
    %v104 = vpack.c.b16 %v95, %v94
    %v105 = vpack.c.b16 %v97, %v96
    %v130 = vunpack.c.l.b16 %v50
    %v131 = vunpack.c.l.b16 %v51
    %v132 = vunpack.c.l.b16 %v52
    %v133 = vunpack.c.l.b16 %v53
    %v134 = vunpack.c.l.b16 %v54
    %v135 = vunpack.c.l.b16 %v55
    %v136 = vunpack.c.l.b16 %v56
    %v137 = vunpack.c.l.b16 %v57
    %v138 = vunpack.c.l.b16 %v58
    %v139 = vunpack.c.l.b16 %v59
    %v140 = vunpack.c.l.b16 %v60
    %v141 = vunpack.c.l.b16 %v61
    %v142 = vunpack.c.l.b16 %v62
    %v143 = vunpack.c.l.b16 %v63
    %v144 = vunpack.c.l.b16 %v64
    %v145 = vunpack.c.l.b16 %v65
    %v146 = vpack.c.b16 %v131, %v130
    %v147 = vpack.c.b16 %v133, %v132
    %v148 = vpack.c.b16 %v135, %v134
    %v149 = vpack.c.b16 %v137, %v136
    %v150 = vpack.c.b16 %v139, %v138
    %v151 = vpack.c.b16 %v141, %v140
    %v152 = vpack.c.b16 %v143, %v142
    %v153 = vpack.c.b16 %v145, %v144
    %162 = vmatpush.bf16.msra.mxu0 %v153
    %163 = vmatpush.bf16.msra.mxu0 %v152
    %164 = vmatpush.bf16.msra.mxu0 %v151
    %165 = vmatpush.bf16.msra.mxu0 %v150
    %166 = vmatpush.bf16.msra.mxu0 %v149
    %167 = vmatpush.bf16.msra.mxu0 %v148
    %168 = vmatpush.bf16.msra.mxu0 %v147
    %169 = vmatpush.bf16.msra.mxu0 %v146
    %170 = vmatmul.bf16.gmra.mxu0 %v98
    %v171 = vpop.f32.mrf.mxu0
    %v172 = vadd.f32 0.0, %v171
    %v173 = vpop.f32.mrf.mxu0
    %v174 = vadd.f32 0.0, %v173
    %175 = vmatmul.bf16.gmra.mxu0 %v99
    %v176 = vpop.f32.mrf.mxu0
    %v177 = vadd.f32 0.0, %v176
    %v178 = vpop.f32.mrf.mxu0
    %v179 = vadd.f32 0.0, %v178
    %180 = vmatmul.bf16.gmra.mxu0 %v100
    %v181 = vpop.f32.mrf.mxu0
    %v182 = vadd.f32 0.0, %v181
    %v183 = vpop.f32.mrf.mxu0
    %v184 = vadd.f32 0.0, %v183
    %185 = vmatmul.bf16.gmra.mxu0 %v101
    %v186 = vpop.f32.mrf.mxu0
    %v187 = vadd.f32 0.0, %v186
    %v188 = vpop.f32.mrf.mxu0
    %v189 = vadd.f32 0.0, %v188
    %190 = vmatmul.bf16.gmra.mxu0 %v102
    %v191 = vpop.f32.mrf.mxu0
    %v192 = vadd.f32 0.0, %v191
    %v193 = vpop.f32.mrf.mxu0
    %v194 = vadd.f32 0.0, %v193
    %195 = vmatmul.bf16.gmra.mxu0 %v103
    %v196 = vpop.f32.mrf.mxu0
    %v197 = vadd.f32 0.0, %v196
    %v198 = vpop.f32.mrf.mxu0
    %v199 = vadd.f32 0.0, %v198
    %200 = vmatmul.bf16.gmra.mxu0 %v104
    %v201 = vpop.f32.mrf.mxu0
    %v202 = vadd.f32 0.0, %v201
    %v203 = vpop.f32.mrf.mxu0
    %v204 = vadd.f32 0.0, %v203
    %205 = vmatmul.bf16.gmra.mxu0 %v105
    %v206 = vpop.f32.mrf.mxu0
    %v207 = vadd.f32 0.0, %v206
    %v208 = vpop.f32.mrf.mxu0
    %v209 = vadd.f32 0.0, %v208
    %210 = vdwg.mxu0
    %v211 = vxor.u32 %v172, 2147483648
    %v212 = vxor.u32 %v174, 2147483648
    %v213 = vxor.u32 %v177, 2147483648
    %v214 = vxor.u32 %v179, 2147483648
    %v215 = vxor.u32 %v182, 2147483648
    %v216 = vxor.u32 %v184, 2147483648
    %v217 = vxor.u32 %v187, 2147483648
    %v218 = vxor.u32 %v189, 2147483648
    %v219 = vxor.u32 %v192, 2147483648
    %v220 = vxor.u32 %v194, 2147483648
    %v221 = vxor.u32 %v197, 2147483648
    %v222 = vxor.u32 %v199, 2147483648
    %v223 = vxor.u32 %v202, 2147483648
    %v224 = vxor.u32 %v204, 2147483648
    %v225 = vxor.u32 %v207, 2147483648
    %v226 = vxor.u32 %v209, 2147483648
    %v227 = vmul.f32 %v211, 1.442695
    %v228 = vpow.pop %v227
    %v229 = vmul.f32 %v212, 1.442695
    %v230 = vpow.pop %v229
    %v231 = vmul.f32 %v213, 1.442695
    %v232 = vpow.pop %v231
    %v233 = vmul.f32 %v214, 1.442695
    %v234 = vpow.pop %v233
    %v235 = vmul.f32 %v215, 1.442695
    %v236 = vpow.pop %v235
    %v237 = vmul.f32 %v216, 1.442695
    %v238 = vpow.pop %v237
    %v239 = vmul.f32 %v217, 1.442695
    %v240 = vpow.pop %v239
    %v241 = vmul.f32 %v218, 1.442695
    %v242 = vpow.pop %v241
    %v243 = vmul.f32 %v219, 1.442695
    %v244 = vpow.pop %v243
    %v245 = vmul.f32 %v220, 1.442695
    %v246 = vpow.pop %v245
    %v247 = vmul.f32 %v221, 1.442695
    %v248 = vpow.pop %v247
    %v249 = vmul.f32 %v222, 1.442695
    %v250 = vpow.pop %v249
    %v251 = vmul.f32 %v223, 1.442695
    %v252 = vpow.pop %v251
    %v253 = vmul.f32 %v224, 1.442695
    %v254 = vpow.pop %v253
    %v255 = vmul.f32 %v225, 1.442695
    %v256 = vpow.pop %v255
    %v257 = vmul.f32 %v226, 1.442695
    %v258 = vpow.pop %v257
    %v259 = vadd.f32 %v228, 1.0
    %v260 = vadd.f32 %v230, 1.0
    %v261 = vadd.f32 %v232, 1.0
    %v262 = vadd.f32 %v234, 1.0
    %v263 = vadd.f32 %v236, 1.0
    %v264 = vadd.f32 %v238, 1.0
    %v265 = vadd.f32 %v240, 1.0
    %v266 = vadd.f32 %v242, 1.0
    %v267 = vadd.f32 %v244, 1.0
    %v268 = vadd.f32 %v246, 1.0
    %v269 = vadd.f32 %v248, 1.0
    %v270 = vadd.f32 %v250, 1.0
    %v271 = vadd.f32 %v252, 1.0
    %v272 = vadd.f32 %v254, 1.0
    %v273 = vadd.f32 %v256, 1.0
    %v274 = vadd.f32 %v258, 1.0
    %v275 = vrcp.pop %v259
    %v276 = vmul.f32 %v259, %v275
    %v277 = vsub.f32 1.0, %v276
    %v278 = vmul.f32 %v275, %v277
    %v279 = vadd.f32 %v275, %v278
    %vm280 = vweird.f32 %v259
    %vm281 = vweird.f32 %v275
    %vm282 = vmor %vm280, %vm281
    %v283 = vsel %vm282, %v275, %v279
    %v284 = vand.u32 2147483647, %v259
    %vm285 = vcmp.eq.f32.partialorder %v284, 8.507059e+37
    %v286 = vand.u32 %v259, 2147483648
    %v287 = vor.u32 1.1754944e-38, %v286
    %v288 = vsel %vm285, %v287, %v283
    %v289 = vmul.f32 1.0, %v288
    %v290 = vrcp.pop %v260
    %v291 = vmul.f32 %v260, %v290
    %v292 = vsub.f32 1.0, %v291
    %v293 = vmul.f32 %v290, %v292
    %v294 = vadd.f32 %v290, %v293
    %vm295 = vweird.f32 %v260
    %vm296 = vweird.f32 %v290
    %vm297 = vmor %vm295, %vm296
    %v298 = vsel %vm297, %v290, %v294
    %v299 = vand.u32 2147483647, %v260
    %vm300 = vcmp.eq.f32.partialorder %v299, 8.507059e+37
    %v301 = vand.u32 %v260, 2147483648
    %v302 = vor.u32 1.1754944e-38, %v301
    %v303 = vsel %vm300, %v302, %v298
    %v304 = vmul.f32 1.0, %v303
    %v305 = vrcp.pop %v261
    %v306 = vmul.f32 %v261, %v305
    %v307 = vsub.f32 1.0, %v306
    %v308 = vmul.f32 %v305, %v307
    %v309 = vadd.f32 %v305, %v308
    %vm310 = vweird.f32 %v261
    %vm311 = vweird.f32 %v305
    %vm312 = vmor %vm310, %vm311
    %v313 = vsel %vm312, %v305, %v309
    %v314 = vand.u32 2147483647, %v261
    %vm315 = vcmp.eq.f32.partialorder %v314, 8.507059e+37
    %v316 = vand.u32 %v261, 2147483648
    %v317 = vor.u32 1.1754944e-38, %v316
    %v318 = vsel %vm315, %v317, %v313
    %v319 = vmul.f32 1.0, %v318
    %v320 = vrcp.pop %v262
    %v321 = vmul.f32 %v262, %v320
    %v322 = vsub.f32 1.0, %v321
    %v323 = vmul.f32 %v320, %v322
    %v324 = vadd.f32 %v320, %v323
    %vm325 = vweird.f32 %v262
    %vm326 = vweird.f32 %v320
    %vm327 = vmor %vm325, %vm326
    %v328 = vsel %vm327, %v320, %v324
    %v329 = vand.u32 2147483647, %v262
    %vm330 = vcmp.eq.f32.partialorder %v329, 8.507059e+37
    %v331 = vand.u32 %v262, 2147483648
    %v332 = vor.u32 1.1754944e-38, %v331
    %v333 = vsel %vm330, %v332, %v328
    %v334 = vmul.f32 1.0, %v333
    %v335 = vrcp.pop %v263
    %v336 = vmul.f32 %v263, %v335
    %v337 = vsub.f32 1.0, %v336
    %v338 = vmul.f32 %v335, %v337
    %v339 = vadd.f32 %v335, %v338
    %vm340 = vweird.f32 %v263
    %vm341 = vweird.f32 %v335
    %vm342 = vmor %vm340, %vm341
    %v343 = vsel %vm342, %v335, %v339
    %v344 = vand.u32 2147483647, %v263
    %vm345 = vcmp.eq.f32.partialorder %v344, 8.507059e+37
    %v346 = vand.u32 %v263, 2147483648
    %v347 = vor.u32 1.1754944e-38, %v346
    %v348 = vsel %vm345, %v347, %v343
    %v349 = vmul.f32 1.0, %v348
    %v350 = vrcp.pop %v264
    %v351 = vmul.f32 %v264, %v350
    %v352 = vsub.f32 1.0, %v351
    %v353 = vmul.f32 %v350, %v352
    %v354 = vadd.f32 %v350, %v353
    %vm355 = vweird.f32 %v264
    %vm356 = vweird.f32 %v350
    %vm357 = vmor %vm355, %vm356
    %v358 = vsel %vm357, %v350, %v354
    %v359 = vand.u32 2147483647, %v264
    %vm360 = vcmp.eq.f32.partialorder %v359, 8.507059e+37
    %v361 = vand.u32 %v264, 2147483648
    %v362 = vor.u32 1.1754944e-38, %v361
    %v363 = vsel %vm360, %v362, %v358
    %v364 = vmul.f32 1.0, %v363
    %v365 = vrcp.pop %v265
    %v366 = vmul.f32 %v265, %v365
    %v367 = vsub.f32 1.0, %v366
    %v368 = vmul.f32 %v365, %v367
    %v369 = vadd.f32 %v365, %v368
    %vm370 = vweird.f32 %v265
    %vm371 = vweird.f32 %v365
    %vm372 = vmor %vm370, %vm371
    %v373 = vsel %vm372, %v365, %v369
    %v374 = vand.u32 2147483647, %v265
    %vm375 = vcmp.eq.f32.partialorder %v374, 8.507059e+37
    %v376 = vand.u32 %v265, 2147483648
    %v377 = vor.u32 1.1754944e-38, %v376
    %v378 = vsel %vm375, %v377, %v373
    %v379 = vmul.f32 1.0, %v378
    %v380 = vrcp.pop %v266
    %v381 = vmul.f32 %v266, %v380
    %v382 = vsub.f32 1.0, %v381
    %v383 = vmul.f32 %v380, %v382
    %v384 = vadd.f32 %v380, %v383
    %vm385 = vweird.f32 %v266
    %vm386 = vweird.f32 %v380
    %vm387 = vmor %vm385, %vm386
    %v388 = vsel %vm387, %v380, %v384
    %v389 = vand.u32 2147483647, %v266
    %vm390 = vcmp.eq.f32.partialorder %v389, 8.507059e+37
    %v391 = vand.u32 %v266, 2147483648
    %v392 = vor.u32 1.1754944e-38, %v391
    %v393 = vsel %vm390, %v392, %v388
    %v394 = vmul.f32 1.0, %v393
    %v395 = vrcp.pop %v267
    %v396 = vmul.f32 %v267, %v395
    %v397 = vsub.f32 1.0, %v396
    %v398 = vmul.f32 %v395, %v397
    %v399 = vadd.f32 %v395, %v398
    %vm400 = vweird.f32 %v267
    %vm401 = vweird.f32 %v395
    %vm402 = vmor %vm400, %vm401
    %v403 = vsel %vm402, %v395, %v399
    %v404 = vand.u32 2147483647, %v267
    %vm405 = vcmp.eq.f32.partialorder %v404, 8.507059e+37
    %v406 = vand.u32 %v267, 2147483648
    %v407 = vor.u32 1.1754944e-38, %v406
    %v408 = vsel %vm405, %v407, %v403
    %v409 = vmul.f32 1.0, %v408
    %v410 = vrcp.pop %v268
    %v411 = vmul.f32 %v268, %v410
    %v412 = vsub.f32 1.0, %v411
    %v413 = vmul.f32 %v410, %v412
    %v414 = vadd.f32 %v410, %v413
    %vm415 = vweird.f32 %v268
    %vm416 = vweird.f32 %v410
    %vm417 = vmor %vm415, %vm416
    %v418 = vsel %vm417, %v410, %v414
    %v419 = vand.u32 2147483647, %v268
    %vm420 = vcmp.eq.f32.partialorder %v419, 8.507059e+37
    %v421 = vand.u32 %v268, 2147483648
    %v422 = vor.u32 1.1754944e-38, %v421
    %v423 = vsel %vm420, %v422, %v418
    %v424 = vmul.f32 1.0, %v423
    %v425 = vrcp.pop %v269
    %v426 = vmul.f32 %v269, %v425
    %v427 = vsub.f32 1.0, %v426
    %v428 = vmul.f32 %v425, %v427
    %v429 = vadd.f32 %v425, %v428
    %vm430 = vweird.f32 %v269
    %vm431 = vweird.f32 %v425
    %vm432 = vmor %vm430, %vm431
    %v433 = vsel %vm432, %v425, %v429
    %v434 = vand.u32 2147483647, %v269
    %vm435 = vcmp.eq.f32.partialorder %v434, 8.507059e+37
    %v436 = vand.u32 %v269, 2147483648
    %v437 = vor.u32 1.1754944e-38, %v436
    %v438 = vsel %vm435, %v437, %v433
    %v439 = vmul.f32 1.0, %v438
    %v440 = vrcp.pop %v270
    %v441 = vmul.f32 %v270, %v440
    %v442 = vsub.f32 1.0, %v441
    %v443 = vmul.f32 %v440, %v442
    %v444 = vadd.f32 %v440, %v443
    %vm445 = vweird.f32 %v270
    %vm446 = vweird.f32 %v440
    %vm447 = vmor %vm445, %vm446
    %v448 = vsel %vm447, %v440, %v444
    %v449 = vand.u32 2147483647, %v270
    %vm450 = vcmp.eq.f32.partialorder %v449, 8.507059e+37
    %v451 = vand.u32 %v270, 2147483648
    %v452 = vor.u32 1.1754944e-38, %v451
    %v453 = vsel %vm450, %v452, %v448
    %v454 = vmul.f32 1.0, %v453
    %v455 = vrcp.pop %v271
    %v456 = vmul.f32 %v271, %v455
    %v457 = vsub.f32 1.0, %v456
    %v458 = vmul.f32 %v455, %v457
    %v459 = vadd.f32 %v455, %v458
    %vm460 = vweird.f32 %v271
    %vm461 = vweird.f32 %v455
    %vm462 = vmor %vm460, %vm461
    %v463 = vsel %vm462, %v455, %v459
    %v464 = vand.u32 2147483647, %v271
    %vm465 = vcmp.eq.f32.partialorder %v464, 8.507059e+37
    %v466 = vand.u32 %v271, 2147483648
    %v467 = vor.u32 1.1754944e-38, %v466
    %v468 = vsel %vm465, %v467, %v463
    %v469 = vmul.f32 1.0, %v468
    %v470 = vrcp.pop %v272
    %v471 = vmul.f32 %v272, %v470
    %v472 = vsub.f32 1.0, %v471
    %v473 = vmul.f32 %v470, %v472
    %v474 = vadd.f32 %v470, %v473
    %vm475 = vweird.f32 %v272
    %vm476 = vweird.f32 %v470
    %vm477 = vmor %vm475, %vm476
    %v478 = vsel %vm477, %v470, %v474
    %v479 = vand.u32 2147483647, %v272
    %vm480 = vcmp.eq.f32.partialorder %v479, 8.507059e+37
    %v481 = vand.u32 %v272, 2147483648
    %v482 = vor.u32 1.1754944e-38, %v481
    %v483 = vsel %vm480, %v482, %v478
    %v484 = vmul.f32 1.0, %v483
    %v485 = vrcp.pop %v273
    %v486 = vmul.f32 %v273, %v485
    %v487 = vsub.f32 1.0, %v486
    %v488 = vmul.f32 %v485, %v487
    %v489 = vadd.f32 %v485, %v488
    %vm490 = vweird.f32 %v273
    %vm491 = vweird.f32 %v485
    %vm492 = vmor %vm490, %vm491
    %v493 = vsel %vm492, %v485, %v489
    %v494 = vand.u32 2147483647, %v273
    %vm495 = vcmp.eq.f32.partialorder %v494, 8.507059e+37
    %v496 = vand.u32 %v273, 2147483648
    %v497 = vor.u32 1.1754944e-38, %v496
    %v498 = vsel %vm495, %v497, %v493
    %v499 = vmul.f32 1.0, %v498
    %v500 = vrcp.pop %v274
    %v501 = vmul.f32 %v274, %v500
    %v502 = vsub.f32 1.0, %v501
    %v503 = vmul.f32 %v500, %v502
    %v504 = vadd.f32 %v500, %v503
    %vm505 = vweird.f32 %v274
    %vm506 = vweird.f32 %v500
    %vm507 = vmor %vm505, %vm506
    %v508 = vsel %vm507, %v500, %v504
    %v509 = vand.u32 2147483647, %v274
    %vm510 = vcmp.eq.f32.partialorder %v509, 8.507059e+37
    %v511 = vand.u32 %v274, 2147483648
    %v512 = vor.u32 1.1754944e-38, %v511
    %v513 = vsel %vm510, %v512, %v508
    %v514 = vmul.f32 1.0, %v513
    %v515 = vld [vmem:[%s1] sm:$0xff]
    %v516 = vld [vmem:[%s1 + $0x8] sm:$0xff]
    %v517 = vld [vmem:[%s1 + $0x10] sm:$0xff]
    %v518 = vld [vmem:[%s1 + $0x18] sm:$0xff]
    %v519 = vld [vmem:[%s1 + $0x20] sm:$0xff]
    %v520 = vld [vmem:[%s1 + $0x28] sm:$0xff]
    %v521 = vld [vmem:[%s1 + $0x30] sm:$0xff]
    %v522 = vld [vmem:[%s1 + $0x38] sm:$0xff]
    %v523 = vld [vmem:[%s1 + $0x40] sm:$0xff]
    %v524 = vld [vmem:[%s1 + $0x48] sm:$0xff]
    %v525 = vld [vmem:[%s1 + $0x50] sm:$0xff]
    %v526 = vld [vmem:[%s1 + $0x58] sm:$0xff]
    %v527 = vld [vmem:[%s1 + $0x60] sm:$0xff]
    %v528 = vld [vmem:[%s1 + $0x68] sm:$0xff]
    %v529 = vld [vmem:[%s1 + $0x70] sm:$0xff]
    %v530 = vld [vmem:[%s1 + $0x78] sm:$0xff]
    %v531 = vlaneseq
    %v532 = vand.u32 %v531, 127
    %533 = vset.pattern.permute.xlu0 0
    %534 = vperm.xlu0 %533, %v515
    %v535 = vpop.permute.xlu0 %534
    %536 = vset.pattern.permute.xlu0 0
    %537 = vperm.xlu0 %536, %v516
    %v538 = vpop.permute.xlu0 %537
    %539 = vset.pattern.permute.xlu0 0
    %540 = vperm.xlu0 %539, %v517
    %v541 = vpop.permute.xlu0 %540
    %542 = vset.pattern.permute.xlu0 0
    %543 = vperm.xlu0 %542, %v518
    %v544 = vpop.permute.xlu0 %543
    %545 = vset.pattern.permute.xlu0 0
    %546 = vperm.xlu0 %545, %v519
    %v547 = vpop.permute.xlu0 %546
    %548 = vset.pattern.permute.xlu0 0
    %549 = vperm.xlu0 %548, %v520
    %v550 = vpop.permute.xlu0 %549
    %551 = vset.pattern.permute.xlu0 0
    %552 = vperm.xlu0 %551, %v521
    %v553 = vpop.permute.xlu0 %552
    %554 = vset.pattern.permute.xlu0 0
    %555 = vperm.xlu0 %554, %v522
    %v556 = vpop.permute.xlu0 %555
    %557 = vset.pattern.permute.xlu0 0
    %558 = vperm.xlu0 %557, %v523
    %v559 = vpop.permute.xlu0 %558
    %560 = vset.pattern.permute.xlu0 0
    %561 = vperm.xlu0 %560, %v524
    %v562 = vpop.permute.xlu0 %561
    %563 = vset.pattern.permute.xlu0 0
    %564 = vperm.xlu0 %563, %v525
    %v565 = vpop.permute.xlu0 %564
    %566 = vset.pattern.permute.xlu0 0
    %567 = vperm.xlu0 %566, %v526
    %v568 = vpop.permute.xlu0 %567
    %569 = vset.pattern.permute.xlu0 0
    %570 = vperm.xlu0 %569, %v527
    %v571 = vpop.permute.xlu0 %570
    %572 = vset.pattern.permute.xlu0 0
    %573 = vperm.xlu0 %572, %v528
    %v574 = vpop.permute.xlu0 %573
    %575 = vset.pattern.permute.xlu0 0
    %576 = vperm.xlu0 %575, %v529
    %v577 = vpop.permute.xlu0 %576
    %578 = vset.pattern.permute.xlu0 0
    %579 = vperm.xlu0 %578, %v530
    %v580 = vpop.permute.xlu0 %579
    %vm581 = vcmp.eq.s32.totalorder %v532, %v535
    %vm582 = vcmp.eq.s32.totalorder %v532, %v538
    %vm583 = vcmp.eq.s32.totalorder %v532, %v541
    %vm584 = vcmp.eq.s32.totalorder %v532, %v544
    %vm585 = vcmp.eq.s32.totalorder %v532, %v547
    %vm586 = vcmp.eq.s32.totalorder %v532, %v550
    %vm587 = vcmp.eq.s32.totalorder %v532, %v553
    %vm588 = vcmp.eq.s32.totalorder %v532, %v556
    %vm589 = vcmp.eq.s32.totalorder %v532, %v559
    %vm590 = vcmp.eq.s32.totalorder %v532, %v562
    %vm591 = vcmp.eq.s32.totalorder %v532, %v565
    %vm592 = vcmp.eq.s32.totalorder %v532, %v568
    %vm593 = vcmp.eq.s32.totalorder %v532, %v571
    %vm594 = vcmp.eq.s32.totalorder %v532, %v574
    %vm595 = vcmp.eq.s32.totalorder %v532, %v577
    %vm596 = vcmp.eq.s32.totalorder %v532, %v580
    %v597 = vsel %vm581, 1, 0
    %v598 = vsel %vm582, 1, 0
    %v599 = vsel %vm583, 1, 0
    %v600 = vsel %vm584, 1, 0
    %v601 = vsel %vm585, 1, 0
    %v602 = vsel %vm586, 1, 0
    %v603 = vsel %vm587, 1, 0
    %v604 = vsel %vm588, 1, 0
    %v605 = vsel %vm589, 1, 0
    %v606 = vsel %vm590, 1, 0
    %v607 = vsel %vm591, 1, 0
    %v608 = vsel %vm592, 1, 0
    %v609 = vsel %vm593, 1, 0
    %v610 = vsel %vm594, 1, 0
    %v611 = vsel %vm595, 1, 0
    %v612 = vsel %vm596, 1, 0
    %v613 = vcvt.s32.f32 %v597
    %v614 = vcvt.s32.f32 %v598
    %v615 = vcvt.s32.f32 %v599
    %v616 = vcvt.s32.f32 %v600
    %v617 = vcvt.s32.f32 %v601
    %v618 = vcvt.s32.f32 %v602
    %v619 = vcvt.s32.f32 %v603
    %v620 = vcvt.s32.f32 %v604
    %v621 = vcvt.s32.f32 %v605
    %v622 = vcvt.s32.f32 %v606
    %v623 = vcvt.s32.f32 %v607
    %v624 = vcvt.s32.f32 %v608
    %v625 = vcvt.s32.f32 %v609
    %v626 = vcvt.s32.f32 %v610
    %v627 = vcvt.s32.f32 %v611
    %v628 = vcvt.s32.f32 %v612
    %v629 = vpack.c.bf16 %v614, %v613
    %v630 = vpack.c.bf16 %v616, %v615
    %v631 = vpack.c.bf16 %v618, %v617
    %v632 = vpack.c.bf16 %v620, %v619
    %v633 = vpack.c.bf16 %v622, %v621
    %v634 = vpack.c.bf16 %v624, %v623
    %v635 = vpack.c.bf16 %v626, %v625
    %v636 = vpack.c.bf16 %v628, %v627
    %v637 = vld [vmem:[#allocation2] sm:$0xf]
    %v638 = vld [vmem:[#allocation2 + $0x4] sm:$0xf]
    %v639 = vld [vmem:[#allocation2 + $0x8] sm:$0xf]
    %v640 = vld [vmem:[#allocation2 + $0xc] sm:$0xf]
    %v641 = vld [vmem:[#allocation2 + $0x10] sm:$0xf]
    %v642 = vld [vmem:[#allocation2 + $0x14] sm:$0xf]
    %v643 = vld [vmem:[#allocation2 + $0x18] sm:$0xf]
    %v644 = vld [vmem:[#allocation2 + $0x1c] sm:$0xf]
    %v645 = vld [vmem:[#allocation2 + $0x20] sm:$0xf]
    %v646 = vld [vmem:[#allocation2 + $0x24] sm:$0xf]
    %v647 = vld [vmem:[#allocation2 + $0x28] sm:$0xf]
    %v648 = vld [vmem:[#allocation2 + $0x2c] sm:$0xf]
    %v649 = vld [vmem:[#allocation2 + $0x30] sm:$0xf]
    %v650 = vld [vmem:[#allocation2 + $0x34] sm:$0xf]
    %v651 = vld [vmem:[#allocation2 + $0x38] sm:$0xf]
    %v652 = vld [vmem:[#allocation2 + $0x3c] sm:$0xf]
    %v669 = vunpack.c.l.b16 %v637
    %v670 = vunpack.c.l.b16 %v638
    %v671 = vunpack.c.l.b16 %v639
    %v672 = vunpack.c.l.b16 %v640
    %v673 = vunpack.c.l.b16 %v641
    %v674 = vunpack.c.l.b16 %v642
    %v675 = vunpack.c.l.b16 %v643
    %v676 = vunpack.c.l.b16 %v644
    %v677 = vunpack.c.l.b16 %v645
    %v678 = vunpack.c.l.b16 %v646
    %v679 = vunpack.c.l.b16 %v647
    %v680 = vunpack.c.l.b16 %v648
    %v681 = vunpack.c.l.b16 %v649
    %v682 = vunpack.c.l.b16 %v650
    %v683 = vunpack.c.l.b16 %v651
    %v684 = vunpack.c.l.b16 %v652
    %v685 = vpack.c.b16 %v670, %v669
    %v686 = vpack.c.b16 %v672, %v671
    %v687 = vpack.c.b16 %v674, %v673
    %v688 = vpack.c.b16 %v676, %v675
    %v689 = vpack.c.b16 %v678, %v677
    %v690 = vpack.c.b16 %v680, %v679
    %v691 = vpack.c.b16 %v682, %v681
    %v692 = vpack.c.b16 %v684, %v683
    %701 = vmatpush.bf16.msra.mxu0 %v692
    %702 = vmatpush.bf16.msra.mxu0 %v691
    %703 = vmatpush.bf16.msra.mxu0 %v690
    %704 = vmatpush.bf16.msra.mxu0 %v689
    %705 = vmatpush.bf16.msra.mxu0 %v688
    %706 = vmatpush.bf16.msra.mxu0 %v687
    %707 = vmatpush.bf16.msra.mxu0 %v686
    %708 = vmatpush.bf16.msra.mxu0 %v685
    %709 = vmatmul.bf16.gmra.mxu0 %v629
    %v710 = vpop.f32.mrf.mxu0
    %v711 = vadd.f32 0.0, %v710
    %v712 = vpop.f32.mrf.mxu0
    %v713 = vadd.f32 0.0, %v712
    %714 = vmatmul.bf16.gmra.mxu0 %v630
    %v715 = vpop.f32.mrf.mxu0
    %v716 = vadd.f32 0.0, %v715
    %v717 = vpop.f32.mrf.mxu0
    %v718 = vadd.f32 0.0, %v717
    %719 = vmatmul.bf16.gmra.mxu0 %v631
    %v720 = vpop.f32.mrf.mxu0
    %v721 = vadd.f32 0.0, %v720
    %v722 = vpop.f32.mrf.mxu0
    %v723 = vadd.f32 0.0, %v722
    %724 = vmatmul.bf16.gmra.mxu0 %v632
    %v725 = vpop.f32.mrf.mxu0
    %v726 = vadd.f32 0.0, %v725
    %v727 = vpop.f32.mrf.mxu0
    %v728 = vadd.f32 0.0, %v727
    %729 = vmatmul.bf16.gmra.mxu0 %v633
    %v730 = vpop.f32.mrf.mxu0
    %v731 = vadd.f32 0.0, %v730
    %v732 = vpop.f32.mrf.mxu0
    %v733 = vadd.f32 0.0, %v732
    %734 = vmatmul.bf16.gmra.mxu0 %v634
    %v735 = vpop.f32.mrf.mxu0
    %v736 = vadd.f32 0.0, %v735
    %v737 = vpop.f32.mrf.mxu0
    %v738 = vadd.f32 0.0, %v737
    %739 = vmatmul.bf16.gmra.mxu0 %v635
    %v740 = vpop.f32.mrf.mxu0
    %v741 = vadd.f32 0.0, %v740
    %v742 = vpop.f32.mrf.mxu0
    %v743 = vadd.f32 0.0, %v742
    %744 = vmatmul.bf16.gmra.mxu0 %v636
    %v745 = vpop.f32.mrf.mxu0
    %v746 = vadd.f32 0.0, %v745
    %v747 = vpop.f32.mrf.mxu0
    %v748 = vadd.f32 0.0, %v747
    %749 = vdwg.mxu0
    %751 = vset.pattern.permute.xlu0 32
    %752 = vperm.xlu0 %751, %v289
    %v753 = vpop.permute.xlu0 %752
    %756 = vset.pattern.permute.xlu0 32
    %757 = vperm.xlu0 %756, %v304
    %v758 = vpop.permute.xlu0 %757
    %761 = vset.pattern.permute.xlu0 32
    %762 = vperm.xlu0 %761, %v319
    %v763 = vpop.permute.xlu0 %762
    %766 = vset.pattern.permute.xlu0 32
    %767 = vperm.xlu0 %766, %v334
    %v768 = vpop.permute.xlu0 %767
    %771 = vset.pattern.permute.xlu0 32
    %772 = vperm.xlu0 %771, %v349
    %v773 = vpop.permute.xlu0 %772
    %776 = vset.pattern.permute.xlu0 32
    %777 = vperm.xlu0 %776, %v364
    %v778 = vpop.permute.xlu0 %777
    %781 = vset.pattern.permute.xlu0 32
    %782 = vperm.xlu0 %781, %v379
    %v783 = vpop.permute.xlu0 %782
    %786 = vset.pattern.permute.xlu0 32
    %787 = vperm.xlu0 %786, %v394
    %v788 = vpop.permute.xlu0 %787
    %791 = vset.pattern.permute.xlu0 32
    %792 = vperm.xlu0 %791, %v409
    %v793 = vpop.permute.xlu0 %792
    %796 = vset.pattern.permute.xlu0 32
    %797 = vperm.xlu0 %796, %v424
    %v798 = vpop.permute.xlu0 %797
    %801 = vset.pattern.permute.xlu0 32
    %802 = vperm.xlu0 %801, %v439
    %v803 = vpop.permute.xlu0 %802
    %806 = vset.pattern.permute.xlu0 32
    %807 = vperm.xlu0 %806, %v454
    %v808 = vpop.permute.xlu0 %807
    %811 = vset.pattern.permute.xlu0 32
    %812 = vperm.xlu0 %811, %v469
    %v813 = vpop.permute.xlu0 %812
    %816 = vset.pattern.permute.xlu0 32
    %817 = vperm.xlu0 %816, %v484
    %v818 = vpop.permute.xlu0 %817
    %821 = vset.pattern.permute.xlu0 32
    %822 = vperm.xlu0 %821, %v499
    %v823 = vpop.permute.xlu0 %822
    %826 = vset.pattern.permute.xlu0 32
    %827 = vperm.xlu0 %826, %v514
    %v828 = vpop.permute.xlu0 %827
    %v830 = vmul.f32 %v711, %v753
    %v831 = vmul.f32 %v713, %v758
    %v832 = vmul.f32 %v716, %v763
    %v833 = vmul.f32 %v718, %v768
    %v834 = vmul.f32 %v721, %v773
    %v835 = vmul.f32 %v723, %v778
    %v836 = vmul.f32 %v726, %v783
    %v837 = vmul.f32 %v728, %v788
    %v838 = vmul.f32 %v731, %v793
    %v839 = vmul.f32 %v733, %v798
    %v840 = vmul.f32 %v736, %v803
    %v841 = vmul.f32 %v738, %v808
    %v842 = vmul.f32 %v741, %v813
    %v843 = vmul.f32 %v743, %v818
    %v844 = vmul.f32 %v746, %v823
    %v845 = vmul.f32 %v748, %v828
    %846 = vset.pattern.permute.xlu0 33
    %847 = vperm.xlu0 %846, %v289
    %v848 = vpop.permute.xlu0 %847
    %850 = vset.pattern.permute.xlu0 33
    %851 = vperm.xlu0 %850, %v304
    %v852 = vpop.permute.xlu0 %851
    %854 = vset.pattern.permute.xlu0 33
    %855 = vperm.xlu0 %854, %v319
    %v856 = vpop.permute.xlu0 %855
    %858 = vset.pattern.permute.xlu0 33
    %859 = vperm.xlu0 %858, %v334
    %v860 = vpop.permute.xlu0 %859
    %862 = vset.pattern.permute.xlu0 33
    %863 = vperm.xlu0 %862, %v349
    %v864 = vpop.permute.xlu0 %863
    %866 = vset.pattern.permute.xlu0 33
    %867 = vperm.xlu0 %866, %v364
    %v868 = vpop.permute.xlu0 %867
    %870 = vset.pattern.permute.xlu0 33
    %871 = vperm.xlu0 %870, %v379
    %v872 = vpop.permute.xlu0 %871
    %874 = vset.pattern.permute.xlu0 33
    %875 = vperm.xlu0 %874, %v394
    %v876 = vpop.permute.xlu0 %875
    %878 = vset.pattern.permute.xlu0 33
    %879 = vperm.xlu0 %878, %v409
    %v880 = vpop.permute.xlu0 %879
    %882 = vset.pattern.permute.xlu0 33
    %883 = vperm.xlu0 %882, %v424
    %v884 = vpop.permute.xlu0 %883
    %886 = vset.pattern.permute.xlu0 33
    %887 = vperm.xlu0 %886, %v439
    %v888 = vpop.permute.xlu0 %887
    %890 = vset.pattern.permute.xlu0 33
    %891 = vperm.xlu0 %890, %v454
    %v892 = vpop.permute.xlu0 %891
    %894 = vset.pattern.permute.xlu0 33
    %895 = vperm.xlu0 %894, %v469
    %v896 = vpop.permute.xlu0 %895
    %898 = vset.pattern.permute.xlu0 33
    %899 = vperm.xlu0 %898, %v484
    %v900 = vpop.permute.xlu0 %899
    %902 = vset.pattern.permute.xlu0 33
    %903 = vperm.xlu0 %902, %v499
    %v904 = vpop.permute.xlu0 %903
    %906 = vset.pattern.permute.xlu0 33
    %907 = vperm.xlu0 %906, %v514
    %v908 = vpop.permute.xlu0 %907
    %v910 = vmul.f32 %v172, %v848
    %v911 = vmul.f32 %v174, %v852
    %v912 = vmul.f32 %v177, %v856
    %v913 = vmul.f32 %v179, %v860
    %v914 = vmul.f32 %v182, %v864
    %v915 = vmul.f32 %v184, %v868
    %v916 = vmul.f32 %v187, %v872
    %v917 = vmul.f32 %v189, %v876
    %v918 = vmul.f32 %v192, %v880
    %v919 = vmul.f32 %v194, %v884
    %v920 = vmul.f32 %v197, %v888
    %v921 = vmul.f32 %v199, %v892
    %v922 = vmul.f32 %v202, %v896
    %v923 = vmul.f32 %v204, %v900
    %v924 = vmul.f32 %v207, %v904
    %v925 = vmul.f32 %v209, %v908
    %v926 = vadd.f32 %v830, %v910
    %v927 = vadd.f32 %v831, %v911
    %v928 = vadd.f32 %v832, %v912
    %v929 = vadd.f32 %v833, %v913
    %v930 = vadd.f32 %v834, %v914
    %v931 = vadd.f32 %v835, %v915
    %v932 = vadd.f32 %v836, %v916
    %v933 = vadd.f32 %v837, %v917
    %v934 = vadd.f32 %v838, %v918
    %v935 = vadd.f32 %v839, %v919
    %v936 = vadd.f32 %v840, %v920
    %v937 = vadd.f32 %v841, %v921
    %v938 = vadd.f32 %v842, %v922
    %v939 = vadd.f32 %v843, %v923
    %v940 = vadd.f32 %v844, %v924
    %v941 = vadd.f32 %v845, %v925
    %943 = vset.pattern.permute.xlu0 32
    %944 = vperm.xlu0 %943, %v711
    %v945 = vpop.permute.xlu0 %944
    %948 = vset.pattern.permute.xlu0 32
    %949 = vperm.xlu0 %948, %v713
    %v950 = vpop.permute.xlu0 %949
    %953 = vset.pattern.permute.xlu0 32
    %954 = vperm.xlu0 %953, %v716
    %v955 = vpop.permute.xlu0 %954
    %958 = vset.pattern.permute.xlu0 32
    %959 = vperm.xlu0 %958, %v718
    %v960 = vpop.permute.xlu0 %959
    %963 = vset.pattern.permute.xlu0 32
    %964 = vperm.xlu0 %963, %v721
    %v965 = vpop.permute.xlu0 %964
    %968 = vset.pattern.permute.xlu0 32
    %969 = vperm.xlu0 %968, %v723
    %v970 = vpop.permute.xlu0 %969
    %973 = vset.pattern.permute.xlu0 32
    %974 = vperm.xlu0 %973, %v726
    %v975 = vpop.permute.xlu0 %974
    %978 = vset.pattern.permute.xlu0 32
    %979 = vperm.xlu0 %978, %v728
    %v980 = vpop.permute.xlu0 %979
    %983 = vset.pattern.permute.xlu0 32
    %984 = vperm.xlu0 %983, %v731
    %v985 = vpop.permute.xlu0 %984
    %988 = vset.pattern.permute.xlu0 32
    %989 = vperm.xlu0 %988, %v733
    %v990 = vpop.permute.xlu0 %989
    %993 = vset.pattern.permute.xlu0 32
    %994 = vperm.xlu0 %993, %v736
    %v995 = vpop.permute.xlu0 %994
    %998 = vset.pattern.permute.xlu0 32
    %999 = vperm.xlu0 %998, %v738
    %v1000 = vpop.permute.xlu0 %999
    %1003 = vset.pattern.permute.xlu0 32
    %1004 = vperm.xlu0 %1003, %v741
    %v1005 = vpop.permute.xlu0 %1004
    %1008 = vset.pattern.permute.xlu0 32
    %1009 = vperm.xlu0 %1008, %v743
    %v1010 = vpop.permute.xlu0 %1009
    %1013 = vset.pattern.permute.xlu0 32
    %1014 = vperm.xlu0 %1013, %v746
    %v1015 = vpop.permute.xlu0 %1014
    %1018 = vset.pattern.permute.xlu0 32
    %1019 = vperm.xlu0 %1018, %v748
    %v1020 = vpop.permute.xlu0 %1019
    %v1022 = vmul.f32 %v926, %v945
    %v1023 = vmul.f32 %v927, %v950
    %v1024 = vmul.f32 %v928, %v955
    %v1025 = vmul.f32 %v929, %v960
    %v1026 = vmul.f32 %v930, %v965
    %v1027 = vmul.f32 %v931, %v970
    %v1028 = vmul.f32 %v932, %v975
    %v1029 = vmul.f32 %v933, %v980
    %v1030 = vmul.f32 %v934, %v985
    %v1031 = vmul.f32 %v935, %v990
    %v1032 = vmul.f32 %v936, %v995
    %v1033 = vmul.f32 %v937, %v1000
    %v1034 = vmul.f32 %v938, %v1005
    %v1035 = vmul.f32 %v939, %v1010
    %v1036 = vmul.f32 %v940, %v1015
    %v1037 = vmul.f32 %v941, %v1020
    %v1038 = vpack.c.bf16 %v1022, %v1022
    %v1039 = vpack.c.bf16 %v1023, %v1023
    %v1040 = vpack.c.bf16 %v1024, %v1024
    %v1041 = vpack.c.bf16 %v1025, %v1025
    %v1042 = vpack.c.bf16 %v1026, %v1026
    %v1043 = vpack.c.bf16 %v1027, %v1027
    %v1044 = vpack.c.bf16 %v1028, %v1028
    %v1045 = vpack.c.bf16 %v1029, %v1029
    %v1046 = vpack.c.bf16 %v1030, %v1030
    %v1047 = vpack.c.bf16 %v1031, %v1031
    %v1048 = vpack.c.bf16 %v1032, %v1032
    %v1049 = vpack.c.bf16 %v1033, %v1033
    %v1050 = vpack.c.bf16 %v1034, %v1034
    %v1051 = vpack.c.bf16 %v1035, %v1035
    %v1052 = vpack.c.bf16 %v1036, %v1036
    %v1053 = vpack.c.bf16 %v1037, %v1037
    %1054 = vst [vmem:[#allocation5] sm:$0xf] %v1038
    %1055 = vst [vmem:[#allocation5 + $0x4] sm:$0xf] %v1039
    %1056 = vst [vmem:[#allocation5 + $0x8] sm:$0xf] %v1040
    %1057 = vst [vmem:[#allocation5 + $0xc] sm:$0xf] %v1041
    %1058 = vst [vmem:[#allocation5 + $0x10] sm:$0xf] %v1042
    %1059 = vst [vmem:[#allocation5 + $0x14] sm:$0xf] %v1043
    %1060 = vst [vmem:[#allocation5 + $0x18] sm:$0xf] %v1044
    %1061 = vst [vmem:[#allocation5 + $0x1c] sm:$0xf] %v1045
    %1062 = vst [vmem:[#allocation5 + $0x20] sm:$0xf] %v1046
    %1063 = vst [vmem:[#allocation5 + $0x24] sm:$0xf] %v1047
    %1064 = vst [vmem:[#allocation5 + $0x28] sm:$0xf] %v1048
    %1065 = vst [vmem:[#allocation5 + $0x2c] sm:$0xf] %v1049
    %1066 = vst [vmem:[#allocation5 + $0x30] sm:$0xf] %v1050
    %1067 = vst [vmem:[#allocation5 + $0x34] sm:$0xf] %v1051
    %1068 = vst [vmem:[#allocation5 + $0x38] sm:$0xf] %v1052
    %1069 = vst [vmem:[#allocation5 + $0x3c] sm:$0xf] %v1053
    // Predicated region
    $region22: #{tpu_custom_call.1} parent=1 // pred_check
      _
    $region23: #{tpu_custom_call.1} parent=1 // pred_check_branch
      %1071 = sbr.rel (0) target = $region25
    $region24: #{tpu_custom_call.1} parent=1 // pred_region
      %1073 = vsyncadd [#allocation4], 0
      %s1074 = sshll.u32 [#allocation5], 4
      %s1075 = int_to_ptr.vmem [resolvable:$true] %s1074
      %s1076 = sshll.u32 %s4, 4
      %s1077 = int_to_ptr.hbm [resolvable:$true] %s1076
      %1082 = dma.vmem_to_hbm [thread:$0]  %s1075, 1024, %s1077, [#allocation4], 64, 64, 4
    $region25: #{tpu_custom_call.1} parent=1 // pred_fallthru
      _
    // Predicated region
    $region26: #{tpu_custom_call.1} parent=1 // pred_check
      _
    $region27: #{tpu_custom_call.1} parent=1 // pred_check_branch
      %1084 = sbr.rel (0) target = $region29
    $region28: #{tpu_custom_call.1} parent=1 // pred_region
      %1086 = dma.done [#allocation4], 1024
    $region29: #{tpu_custom_call.1} parent=1 // pred_fallthru
      _
    %1087 = vsyncpa [#allocation3], 1
    %1088 = vsyncpa [#allocation4], 1

</llo_original>
